<compile_context>
chip_gen: v7x
topology: tpu7x:2x2x1
jax: 0.10.0
libtpu: 0.0.40
codegen_flags: <defaults>
</compile_context>

<pallas_src>
import functools

import jax
import jax.numpy as jnp
import numpy as np
from jax.experimental import pallas as pl
from jax.experimental.pallas import tpu as pltpu


# ------------------------------------ kernel ------------------------------------

def _bottleneck_kernel(x_ref, wcat_ref, bcat_ref, wdw_ref, bdw_ref, wpw_ref, bpw_ref,
                       w3_ref, b3_ref, o_ref, y_scr,
                       *, TL, HP, L, k, cmid_p, compute_dtype):
    """One (batch item, row-tile) grid step.

    x_ref   : (TL + 2*HP, Cin_p)  bf16  - row tile with HP halo rows on each side
    wcat_ref: (Cin_p, Cmid_p+Cout_p)    - fused [layer1 | skip] 1x1 weights (bf16)
    wdw_ref : (k, 1, Cmid_p) f32        - depthwise taps (inner BN folded)
    o_ref   : (TL, Cout_p)  f32         - lane-dense output tile
    y_scr   : (TL + 2*HP, Cmid_p) f32   - VMEM scratch: zero-masked layer1 output
    """
    j = pl.program_id(1)
    p = (k - 1) // 2

    xh = x_ref[...]                                    # (TLH, Cin_p)
    TLH = xh.shape[0]

    # --- fused layer1 + residual-skip 1x1 convs: one MXU pass over x ---
    z = jnp.dot(xh, wcat_ref[...], preferred_element_type=jnp.float32) + bcat_ref[...]
    y1 = jnp.maximum(z[:, :cmid_p], 0.0)               # layer1 path (folded BN + ReLU)
    skip = z[HP:HP + TL, cmid_p:]                      # skip path (no BN/act), interior rows

    # --- zero rows outside the valid sequence [0, L): ONE mask per tile, not per tap ---
    row = j * TL - HP + jax.lax.broadcasted_iota(jnp.int32, (TLH, 1), 0)
    y_scr[...] = jnp.where((row >= 0) & (row < L), y1, 0.0)

    # --- depthwise conv along rows: static shifted reads of the halo'd scratch ---
    acc = jnp.zeros((TL, cmid_p), jnp.float32)
    for t in range(k):                                 # k is small & static -> unrolled
        start = HP - p + t
        acc = acc + y_scr[start:start + TL, :] * wdw_ref[t]
    y = jnp.maximum(acc + bdw_ref[...], 0.0)           # inner BN folded + ReLU

    # --- pointwise 1x1 conv (+ folded outer BN) + ReLU ---
    y = jnp.dot(y.astype(compute_dtype), wpw_ref[...],
                preferred_element_type=jnp.float32) + bpw_ref[...]
    y = jnp.maximum(y, 0.0)

    # --- layer3 1x1 conv (+ folded BN) + ReLU ---
    y = jnp.dot(y.astype(compute_dtype), w3_ref[...],
                preferred_element_type=jnp.float32) + b3_ref[...]
    y = jnp.maximum(y, 0.0)

    # --- residual add (skip conv already produced by the fused first matmul) ---
    o_ref[...] = (y + skip).astype(o_ref.dtype)


# ------------------------------------ wrapper ------------------------------------

def _round_up(v, m):
    return ((v + m - 1) // m) * m


def _prepare_kernel_params(p, cin_p, cmid_p, cout_p, compute_dtype):
    """Zero-pad channels to lane-dense widths, fuse layer1+skip weights, cast matmul
    operands to the MXU compute dtype (biases / depthwise taps stay f32)."""
    def pad2(a, r, c):
        return jnp.zeros((r, c), jnp.float32).at[:a.shape[0], :a.shape[1]].set(a)

    wcat = jnp.concatenate([pad2(p["w1"], cin_p, cmid_p),
                            pad2(p["wskip"], cin_p, cout_p)], axis=1).astype(compute_dtype)
    bcat = jnp.concatenate([pad2(p["b1"], 1, cmid_p),
                            pad2(p["bskip"], 1, cout_p)], axis=1)
    k = p["wdw"].shape[0]
    wdw = pad2(p["wdw"], k, cmid_p).reshape(k, 1, cmid_p)          # per-tap (1, Cmid_p) rows
    return dict(
        wcat=wcat, bcat=bcat, wdw=wdw,
        bdw=pad2(p["bdw"], 1, cmid_p),
        wpw=pad2(p["wpw"], cmid_p, cmid_p).astype(compute_dtype),
        bpw=pad2(p["bpw"], 1, cmid_p),
        w3=pad2(p["w3"], cmid_p, cout_p).astype(compute_dtype),
        b3=pad2(p["b3"], 1, cout_p),
    )


def bottleneck_block(x_ncl, params, *, compute_dtype=jnp.bfloat16, row_tile=256):
    """Forward pass. x_ncl: (N, Cin, L) float32 (PyTorch layout). Returns (N, Cout, L) f32."""
    N, Cin, L = x_ncl.shape
    k, Cmid = params["wdw"].shape
    Cout = params["w3"].shape[1]
    p = (k - 1) // 2
    assert k % 2 == 1, "even depthwise kernel sizes change Conv1d output alignment"
    HP = max(8, _round_up(p, 8))               # halo rows per side (multiple of 8, >= p)
    assert row_tile % 8 == 0

    Cin_p, Cmid_p, Cout_p = (_round_up(c, 128) for c in (Cin, Cmid, Cout))
    TL = min(row_tile, _round_up(L, 8))        # row tile = sublane / MXU-M dimension
    NT = -(-L // TL)
    Lp = NT * TL
    TLH = TL + 2 * HP

    # --- lane-dense, halo'd input tiles: (N, NT, TL + 2*HP, Cin_p), bf16 ---
    x_nlc = jnp.transpose(x_ncl, (0, 2, 1))
    xc = jnp.zeros((N, L, Cin_p), jnp.float32).at[:, :, :Cin].set(x_nlc)
    xpp = jnp.zeros((N, HP + Lp + HP, Cin_p), jnp.float32).at[:, HP:HP + L, :].set(xc)
    x_halo = jnp.stack([xpp[:, j * TL:j * TL + TLH, :] for j in range(NT)], axis=1)
    x_halo = x_halo.astype(compute_dtype)

    kp = _prepare_kernel_params(params, Cin_p, Cmid_p, Cout_p, compute_dtype)
    weights = [kp[n] for n in ("wcat", "bcat", "wdw", "bdw", "wpw", "bpw", "w3", "b3")]

    def const_spec(a):                         # whole-array block, constant index map
        nd = a.ndim
        return pl.BlockSpec(a.shape, lambda n, j, _nd=nd: (0,) * _nd)
    # TODO(synk): on v7x (64 MiB VMEM), single-buffer the constant-index weight blocks
    # (pipeline_mode=pl.Buffered(1)) once channel widths make weights VMEM-significant.

    in_specs = [pl.BlockSpec((None, None, TLH, Cin_p), lambda n, j: (n, j, 0, 0))]
    in_specs += [const_spec(w) for w in weights]
    out_spec = pl.BlockSpec((None, TL, Cout_p), lambda n, j: (n, j, 0))

    kernel = functools.partial(_bottleneck_kernel, TL=TL, HP=HP, L=L, k=k,
                               cmid_p=Cmid_p, compute_dtype=compute_dtype)

    out_p = pl.pallas_call(
        kernel,
        out_shape=jax.ShapeDtypeStruct((N, Lp, Cout_p), jnp.float32),
        grid=(N, NT),
        in_specs=in_specs,
        out_specs=out_spec,
        scratch_shapes=[pltpu.VMEM((TLH, Cmid_p), jnp.float32)],
        compiler_params=pltpu.CompilerParams(
            dimension_semantics=("parallel", "parallel")),
    )(x_halo, *weights)

    out = out_p[:, :L, :Cout]                  # drop row / channel padding
    return jnp.transpose(out, (0, 2, 1))       # back to PyTorch (N, Cout, L)


# ----------------------- parameter construction (deterministic) -----------------------

def _fold_bn(w_mat, b, gamma, beta, mean, var, eps=1e-5):
    """Fold eval-mode BatchNorm1d into a conv weight (..., Cout) and bias (Cout,)."""
    s = gamma / jnp.sqrt(var + eps)
    return w_mat * s[None, :], b * s + beta - mean * s


def make_params(key, cin, cmid, cout, ksize):
    ks = iter(jax.random.split(key, 32))      # over-provision keys (26 are consumed)
    nxt = lambda: next(ks)

    def conv_w(ci, co):                        # stored as (Ci, Co) so kernel does x @ W
        return 0.2 * jax.random.normal(nxt(), (ci, co), jnp.float32)

    def bias(c):
        return 0.1 * jax.random.normal(nxt(), (c,), jnp.float32)

    def bn(c):
        gamma = 1.0 + 0.1 * jax.random.normal(nxt(), (c,), jnp.float32)
        beta = 0.1 * jax.random.normal(nxt(), (c,), jnp.float32)
        mean = 0.1 * jax.random.normal(nxt(), (c,), jnp.float32)
        var = 0.5 + jax.random.uniform(nxt(), (c,), jnp.float32)
        return gamma, beta, mean, var

    # layer1: Conv1d(cin, cmid, 1) + BN(cmid)
    w1, b1 = _fold_bn(conv_w(cin, cmid), bias(cmid), *bn(cmid))
    # layer2: depthwise Conv1d(cmid, cmid, k, groups=cmid) + inner BN(cmid)
    wdw_raw = 0.2 * jax.random.normal(nxt(), (ksize, cmid), jnp.float32)   # W[c,0,t] -> [t,c]
    wdw, bdw = _fold_bn(wdw_raw, bias(cmid), *bn(cmid))
    #          pointwise Conv1d(cmid, cmid, 1) + outer BN(cmid)
    wpw, bpw = _fold_bn(conv_w(cmid, cmid), bias(cmid), *bn(cmid))
    # layer3: Conv1d(cmid, cout, 1) + BN(cout)
    w3, b3 = _fold_bn(conv_w(cmid, cout), bias(cout), *bn(cout))
    # skip: Conv1d(cin, cout, 1), no BN
    wskip, bskip = conv_w(cin, cout), bias(cout)

    b2d = lambda b: b.reshape(1, -1)           # biases as (1, C) for 2-D broadcasting
    return dict(w1=w1, b1=b2d(b1), wdw=wdw, bdw=b2d(bdw), wpw=wpw, bpw=b2d(bpw),
                w3=w3, b3=b2d(b3), wskip=wskip, bskip=b2d(bskip))


# --------------------------------- pure-JAX reference ---------------------------------

def reference(x_nlc, p, compute_dtype=jnp.bfloat16):
    """Reference in (N, L, C) layout, mirroring the kernel's dtype policy (bf16 matmul
    operands, f32 accumulation / elementwise)."""
    relu = lambda v: jnp.maximum(v, 0.0)
    c = lambda a: a.astype(compute_dtype).astype(jnp.float32)
    x = c(x_nlc)
    y = relu(jnp.einsum("nlc,cd->nld", x, c(p["w1"])) + p["b1"])
    k = p["wdw"].shape[0]
    pad = (k - 1) // 2
    yp = jnp.pad(y, ((0, 0), (pad, pad), (0, 0)))
    acc = jnp.zeros_like(y)
    for t in range(k):
        acc = acc + yp[:, t:t + y.shape[1], :] * p["wdw"][t][None, None, :]
    y = relu(acc + p["bdw"])
    y = relu(jnp.einsum("nlc,cd->nld", c(y), c(p["wpw"])) + p["bpw"])
    y = relu(jnp.einsum("nlc,cd->nld", c(y), c(p["w3"])) + p["b3"])
    return y + jnp.einsum("nlc,cd->nld", x, c(p["wskip"])) + p["bskip"]


if __name__ == "__main__":
    N, Cin, Cmid, Cout, L, K = 2, 8, 16, 8, 16, 3

    key = jax.random.PRNGKey(0)
    kx, kp = jax.random.split(key)
    x_ncl = jax.random.normal(kx, (N, Cin, L), jnp.float32)   # PyTorch Conv1d layout
    params = make_params(kp, Cin, Cmid, Cout, K)

    out_ncl = bottleneck_block(x_ncl, params)                 # (N, Cout, L)
    out_ncl = jax.block_until_ready(out_ncl)

    ref_nlc = reference(jnp.transpose(x_ncl, (0, 2, 1)), params)
    ref_ncl = jnp.transpose(ref_nlc, (0, 2, 1))
    np.testing.assert_allclose(np.asarray(out_ncl), np.asarray(ref_ncl),
                               rtol=1e-2, atol=1e-2)

    print("KERNEL_OK")
</pallas_src>

<mosaic_0001>
module attributes {stable_mosaic.version = 11 : i64} {
  func.func @_bottleneck_kernel(%arg0: i32, %arg1: i32, %arg2: memref<1x1x32x128xbf16, #tpu.memory_space<vmem>>, %arg3: memref<128x256xbf16, #tpu.memory_space<vmem>>, %arg4: memref<1x256xf32, #tpu.memory_space<vmem>>, %arg5: memref<3x1x128xf32, #tpu.memory_space<vmem>>, %arg6: memref<1x128xf32, #tpu.memory_space<vmem>>, %arg7: memref<128x128xbf16, #tpu.memory_space<vmem>>, %arg8: memref<1x128xf32, #tpu.memory_space<vmem>>, %arg9: memref<128x128xbf16, #tpu.memory_space<vmem>>, %arg10: memref<1x128xf32, #tpu.memory_space<vmem>>, %arg11: memref<1x16x128xf32, #tpu.memory_space<vmem>>, %arg12: memref<32x128xf32, #tpu.memory_space<vmem>>) attributes {dimension_semantics = [#tpu.dimension_semantics<parallel>, #tpu.dimension_semantics<parallel>], iteration_bounds = array<i64: 2, 1>, scalar_prefetch = 0 : i64, scratch_operands = 1 : i64, tpu.core_type = #tpu.core_type<tc>, window_params = [{transform_indices = @transform_0, window_bounds = array<i64: 1, 1, 32, 128>}, {pipeline_mode = #tpu.pipeline_mode<synchronous>, transform_indices = @transform_1, window_bounds = array<i64: 128, 256>}, {pipeline_mode = #tpu.pipeline_mode<synchronous>, transform_indices = @transform_2, window_bounds = array<i64: 1, 256>}, {pipeline_mode = #tpu.pipeline_mode<synchronous>, transform_indices = @transform_3, window_bounds = array<i64: 3, 1, 128>}, {pipeline_mode = #tpu.pipeline_mode<synchronous>, transform_indices = @transform_4, window_bounds = array<i64: 1, 128>}, {pipeline_mode = #tpu.pipeline_mode<synchronous>, transform_indices = @transform_5, window_bounds = array<i64: 128, 128>}, {pipeline_mode = #tpu.pipeline_mode<synchronous>, transform_indices = @transform_6, window_bounds = array<i64: 1, 128>}, {pipeline_mode = #tpu.pipeline_mode<synchronous>, transform_indices = @transform_7, window_bounds = array<i64: 128, 128>}, {pipeline_mode = #tpu.pipeline_mode<synchronous>, transform_indices = @transform_8, window_bounds = array<i64: 1, 128>}, {transform_indices = @transform_9, window_bounds = array<i64: 1, 16, 128>}]} {
    %c0 = arith.constant 0 : index
    %c0_0 = arith.constant 0 : index
    %c0_1 = arith.constant 0 : index
    %c0_2 = arith.constant 0 : index
    %0 = vector.load %arg2[%c0, %c0_0, %c0_1, %c0_2] : memref<1x1x32x128xbf16, #tpu.memory_space<vmem>>, vector<1x1x32x128xbf16>
    %1 = vector.shape_cast %0 : vector<1x1x32x128xbf16> to vector<32x128xbf16>
    %c0_3 = arith.constant 0 : index
    %c0_4 = arith.constant 0 : index
    %2 = vector.load %arg3[%c0_3, %c0_4] : memref<128x256xbf16, #tpu.memory_space<vmem>>, vector<128x256xbf16>
    %cst = arith.constant dense<0.000000e+00> : vector<32x256xf32>
    %3 = tpu.matmul %1, %2, %cst {dimension_numbers = #tpu.dot_dimension_numbers<[1], [0], [0], [1], [0, 0, 1, 1], [], []>} : vector<32x128xbf16>, vector<128x256xbf16>, vector<32x256xf32> -> vector<32x256xf32>
    %c0_5 = arith.constant 0 : index
    %c0_6 = arith.constant 0 : index
    %4 = vector.load %arg4[%c0_5, %c0_6] : memref<1x256xf32, #tpu.memory_space<vmem>>, vector<1x256xf32>
    %5 = vector.broadcast %4 : vector<1x256xf32> to vector<32x256xf32>
    %6 = arith.addf %3, %5 : vector<32x256xf32>
    %7 = vector.extract_strided_slice %6 {offsets = [0, 0], sizes = [32, 128], strides = [1, 1]} : vector<32x256xf32> to vector<32x128xf32>
    %cst_7 = arith.constant 0.000000e+00 : f32
    %8 = vector.broadcast %cst_7 : f32 to vector<32x128xf32>
    %9 = arith.maximumf %7, %8 : vector<32x128xf32>
    %10 = vector.extract_strided_slice %6 {offsets = [8, 128], sizes = [16, 128], strides = [1, 1]} : vector<32x256xf32> to vector<16x128xf32>
    %c16_i32 = arith.constant 16 : i32
    %11 = arith.muli %arg1, %c16_i32 : i32
    %c8_i32 = arith.constant 8 : i32
    %12 = arith.subi %11, %c8_i32 : i32
    %13 = tpu.iota {dimensions = array<i32: 0>} : vector<32x1xi32>
    %14 = vector.broadcast %12 : i32 to vector<32x1xi32>
    %15 = arith.addi %14, %13 : vector<32x1xi32>
    %c0_i32 = arith.constant 0 : i32
    %16 = vector.broadcast %c0_i32 : i32 to vector<32x1xi32>
    %17 = arith.cmpi sge, %15, %16 : vector<32x1xi32>
    %c16_i32_8 = arith.constant 16 : i32
    %18 = vector.broadcast %c16_i32_8 : i32 to vector<32x1xi32>
    %19 = arith.cmpi slt, %15, %18 : vector<32x1xi32>
    %20 = arith.andi %17, %19 : vector<32x1xi1>
    %cst_9 = arith.constant 0.000000e+00 : f32
    %21 = vector.shape_cast %20 : vector<32x1xi1> to vector<32x1xi1>
    %22 = vector.broadcast %21 : vector<32x1xi1> to vector<32x128xi1>
    %23 = vector.broadcast %cst_9 : f32 to vector<32x128xf32>
    %24 = arith.select %22, %9, %23 : vector<32x128xi1>, vector<32x128xf32>
    %c0_10 = arith.constant 0 : index
    %c0_11 = arith.constant 0 : index
    %25 = vector.load %arg12[%c0_10, %c0_11] : memref<32x128xf32, #tpu.memory_space<vmem>>, vector<32x128xf32>
    tpu.vector_store %arg12[%c0_10, %c0_11], %24 {strides = array<i32>} : memref<32x128xf32, #tpu.memory_space<vmem>>, vector<32x128xf32>,
    %cst_12 = arith.constant 0.000000e+00 : f32
    %26 = vector.broadcast %cst_12 : f32 to vector<16x128xf32>
    %c7 = arith.constant 7 : index
    %c0_13 = arith.constant 0 : index
    %27 = vector.load %arg12[%c7, %c0_13] : memref<32x128xf32, #tpu.memory_space<vmem>>, vector<16x128xf32>
    %c0_14 = arith.constant 0 : index
    %c0_15 = arith.constant 0 : index
    %c0_16 = arith.constant 0 : index
    %28 = vector.load %arg5[%c0_14, %c0_15, %c0_16] : memref<3x1x128xf32, #tpu.memory_space<vmem>>, vector<1x1x128xf32>
    %29 = vector.shape_cast %28 : vector<1x1x128xf32> to vector<1x128xf32>
    %30 = vector.broadcast %29 : vector<1x128xf32> to vector<16x128xf32>
    %31 = arith.mulf %27, %30 : vector<16x128xf32>
    %32 = arith.addf %26, %31 : vector<16x128xf32>
    %c8 = arith.constant 8 : index
    %c0_17 = arith.constant 0 : index
    %33 = vector.load %arg12[%c8, %c0_17] : memref<32x128xf32, #tpu.memory_space<vmem>>, vector<16x128xf32>
    %c1 = arith.constant 1 : index
    %c0_18 = arith.constant 0 : index
    %c0_19 = arith.constant 0 : index
    %34 = vector.load %arg5[%c1, %c0_18, %c0_19] : memref<3x1x128xf32, #tpu.memory_space<vmem>>, vector<1x1x128xf32>
    %35 = vector.shape_cast %34 : vector<1x1x128xf32> to vector<1x128xf32>
    %36 = vector.broadcast %35 : vector<1x128xf32> to vector<16x128xf32>
    %37 = arith.mulf %33, %36 : vector<16x128xf32>
    %38 = arith.addf %32, %37 : vector<16x128xf32>
    %c9 = arith.constant 9 : index
    %c0_20 = arith.constant 0 : index
    %39 = vector.load %arg12[%c9, %c0_20] : memref<32x128xf32, #tpu.memory_space<vmem>>, vector<16x128xf32>
    %c2 = arith.constant 2 : index
    %c0_21 = arith.constant 0 : index
    %c0_22 = arith.constant 0 : index
    %40 = vector.load %arg5[%c2, %c0_21, %c0_22] : memref<3x1x128xf32, #tpu.memory_space<vmem>>, vector<1x1x128xf32>
    %41 = vector.shape_cast %40 : vector<1x1x128xf32> to vector<1x128xf32>
    %42 = vector.broadcast %41 : vector<1x128xf32> to vector<16x128xf32>
    %43 = arith.mulf %39, %42 : vector<16x128xf32>
    %44 = arith.addf %38, %43 : vector<16x128xf32>
    %c0_23 = arith.constant 0 : index
    %c0_24 = arith.constant 0 : index
    %45 = vector.load %arg6[%c0_23, %c0_24] : memref<1x128xf32, #tpu.memory_space<vmem>>, vector<1x128xf32>
    %46 = vector.broadcast %45 : vector<1x128xf32> to vector<16x128xf32>
    %47 = arith.addf %44, %46 : vector<16x128xf32>
    %cst_25 = arith.constant 0.000000e+00 : f32
    %48 = vector.broadcast %cst_25 : f32 to vector<16x128xf32>
    %49 = arith.maximumf %47, %48 : vector<16x128xf32>
    %50 = arith.truncf %49 : vector<16x128xf32> to vector<16x128xbf16>
    %c0_26 = arith.constant 0 : index
    %c0_27 = arith.constant 0 : index
    %51 = vector.load %arg7[%c0_26, %c0_27] : memref<128x128xbf16, #tpu.memory_space<vmem>>, vector<128x128xbf16>
    %cst_28 = arith.constant dense<0.000000e+00> : vector<16x128xf32>
    %52 = tpu.matmul %50, %51, %cst_28 {dimension_numbers = #tpu.dot_dimension_numbers<[1], [0], [0], [1], [0, 0, 1, 1], [], []>} : vector<16x128xbf16>, vector<128x128xbf16>, vector<16x128xf32> -> vector<16x128xf32>
    %c0_29 = arith.constant 0 : index
    %c0_30 = arith.constant 0 : index
    %53 = vector.load %arg8[%c0_29, %c0_30] : memref<1x128xf32, #tpu.memory_space<vmem>>, vector<1x128xf32>
    %54 = vector.broadcast %53 : vector<1x128xf32> to vector<16x128xf32>
    %55 = arith.addf %52, %54 : vector<16x128xf32>
    %cst_31 = arith.constant 0.000000e+00 : f32
    %56 = vector.broadcast %cst_31 : f32 to vector<16x128xf32>
    %57 = arith.maximumf %55, %56 : vector<16x128xf32>
    %58 = arith.truncf %57 : vector<16x128xf32> to vector<16x128xbf16>
    %c0_32 = arith.constant 0 : index
    %c0_33 = arith.constant 0 : index
    %59 = vector.load %arg9[%c0_32, %c0_33] : memref<128x128xbf16, #tpu.memory_space<vmem>>, vector<128x128xbf16>
    %cst_34 = arith.constant dense<0.000000e+00> : vector<16x128xf32>
    %60 = tpu.matmul %58, %59, %cst_34 {dimension_numbers = #tpu.dot_dimension_numbers<[1], [0], [0], [1], [0, 0, 1, 1], [], []>} : vector<16x128xbf16>, vector<128x128xbf16>, vector<16x128xf32> -> vector<16x128xf32>
    %c0_35 = arith.constant 0 : index
    %c0_36 = arith.constant 0 : index
    %61 = vector.load %arg10[%c0_35, %c0_36] : memref<1x128xf32, #tpu.memory_space<vmem>>, vector<1x128xf32>
    %62 = vector.broadcast %61 : vector<1x128xf32> to vector<16x128xf32>
    %63 = arith.addf %60, %62 : vector<16x128xf32>
    %cst_37 = arith.constant 0.000000e+00 : f32
    %64 = vector.broadcast %cst_37 : f32 to vector<16x128xf32>
    %65 = arith.maximumf %63, %64 : vector<16x128xf32>
    %66 = arith.addf %65, %10 : vector<16x128xf32>
    %c0_38 = arith.constant 0 : index
    %c0_39 = arith.constant 0 : index
    %c0_40 = arith.constant 0 : index
    %67 = vector.load %arg11[%c0_38, %c0_39, %c0_40] : memref<1x16x128xf32, #tpu.memory_space<vmem>>, vector<1x16x128xf32>
    %68 = vector.shape_cast %67 : vector<1x16x128xf32> to vector<16x128xf32>
    %69 = vector.shape_cast %66 : vector<16x128xf32> to vector<1x16x128xf32>
    tpu.vector_store %arg11[%c0_38, %c0_39, %c0_40], %69 {strides = array<i32>} : memref<1x16x128xf32, #tpu.memory_space<vmem>>, vector<1x16x128xf32>,
    return
  }
  func.func @transform_0(%arg0: i32, %arg1: i32) -> (i32, i32, i32, i32) {
    %c0_i32 = arith.constant 0 : i32
    %c0_i32_0 = arith.constant 0 : i32
    %c0_i32_1 = arith.constant 0 : i32
    return %arg0, %arg1, %c0_i32, %c0_i32_0 : i32, i32, i32, i32
  }
  func.func @transform_1(%arg0: i32, %arg1: i32) -> (i32, i32) {
    %c0_i32 = arith.constant 0 : i32
    %c0_i32_0 = arith.constant 0 : i32
    %c0_i32_1 = arith.constant 0 : i32
    return %c0_i32, %c0_i32_0 : i32, i32
  }
  func.func @transform_2(%arg0: i32, %arg1: i32) -> (i32, i32) {
    %c0_i32 = arith.constant 0 : i32
    %c0_i32_0 = arith.constant 0 : i32
    %c0_i32_1 = arith.constant 0 : i32
    return %c0_i32, %c0_i32_0 : i32, i32
  }
  func.func @transform_3(%arg0: i32, %arg1: i32) -> (i32, i32, i32) {
    %c0_i32 = arith.constant 0 : i32
    %c0_i32_0 = arith.constant 0 : i32
    %c0_i32_1 = arith.constant 0 : i32
    %c0_i32_2 = arith.constant 0 : i32
    return %c0_i32, %c0_i32_0, %c0_i32_1 : i32, i32, i32
  }
  func.func @transform_4(%arg0: i32, %arg1: i32) -> (i32, i32) {
    %c0_i32 = arith.constant 0 : i32
    %c0_i32_0 = arith.constant 0 : i32
    %c0_i32_1 = arith.constant 0 : i32
    return %c0_i32, %c0_i32_0 : i32, i32
  }
  func.func @transform_5(%arg0: i32, %arg1: i32) -> (i32, i32) {
    %c0_i32 = arith.constant 0 : i32
    %c0_i32_0 = arith.constant 0 : i32
    %c0_i32_1 = arith.constant 0 : i32
    return %c0_i32, %c0_i32_0 : i32, i32
  }
  func.func @transform_6(%arg0: i32, %arg1: i32) -> (i32, i32) {
    %c0_i32 = arith.constant 0 : i32
    %c0_i32_0 = arith.constant 0 : i32
    %c0_i32_1 = arith.constant 0 : i32
    return %c0_i32, %c0_i32_0 : i32, i32
  }
  func.func @transform_7(%arg0: i32, %arg1: i32) -> (i32, i32) {
    %c0_i32 = arith.constant 0 : i32
    %c0_i32_0 = arith.constant 0 : i32
    %c0_i32_1 = arith.constant 0 : i32
    return %c0_i32, %c0_i32_0 : i32, i32
  }
  func.func @transform_8(%arg0: i32, %arg1: i32) -> (i32, i32) {
    %c0_i32 = arith.constant 0 : i32
    %c0_i32_0 = arith.constant 0 : i32
    %c0_i32_1 = arith.constant 0 : i32
    return %c0_i32, %c0_i32_0 : i32, i32
  }
  func.func @transform_9(%arg0: i32, %arg1: i32) -> (i32, i32, i32) {
    %c0_i32 = arith.constant 0 : i32
    %c0_i32_0 = arith.constant 0 : i32
    return %arg0, %arg1, %c0_i32 : i32, i32, i32
  }
}

</mosaic_0001>

<llo_original>
// kernel: tpu_custom_call.1
$region0: #{tpu_custom_call.1}
  #allocation0 [shape = 'u32[]', space=smem, size = 0x4, offset = 0x4, fixed_abs, tag = 'smem constant byte address 0x4 - core index']
  #allocation1 [shape = 'u32[144,128]{1,0:T(1,128)}', space=vmem, size = 0x12000, scoped, tag = 'internal scratch']
  #allocation2 [shape = 'f32[32,128]{1,0:T(8,128)}', space=vmem, size = 0x4000, scoped, tag = 'scratch operand']
  %s0 = inlined_call_operand.hbm [shape: bf16[2,1,32,128], index: 0, kind: input, shape index: {}]
  %s1 = inlined_call_operand.hbm [shape: bf16[128,256], index: 1, kind: input, shape index: {}]
  %s2 = inlined_call_operand.vmem [shape: f32[1,256], index: 2, kind: input, shape index: {}]
  %s3 = inlined_call_operand.vmem [shape: f32[3,1,128], index: 3, kind: input, shape index: {}]
  %s4 = inlined_call_operand.vmem [shape: f32[1,128], index: 4, kind: input, shape index: {}]
  %s5 = inlined_call_operand.hbm [shape: bf16[128,128], index: 5, kind: input, shape index: {}]
  %s6 = inlined_call_operand.vmem [shape: f32[1,128], index: 6, kind: input, shape index: {}]
  %s7 = inlined_call_operand.hbm [shape: bf16[128,128], index: 7, kind: input, shape index: {}]
  %s8 = inlined_call_operand.vmem [shape: f32[1,128], index: 8, kind: input, shape index: {}]
  %s9 = inlined_call_operand.hbm [shape: f32[2,16,128], index: 9, kind: output, shape index: {}]
  %s10 = sld [smem:[#allocation0]]
  $region85: #{tpu_custom_call.1} parent=0
    _
  %s12 = ssub.s32 1, %s10
  %s13 = scalar_select 0, %s12, %s10
  $region1: #{tpu_custom_call.1} parent=0
    #allocation3 [shape = 'u8[16384]{0}', space=vmem, size = 0x4000, scoped, tag = 'input window, operand 0']
    #allocation4 [shape = 's32[2]{0}', space=sflag, size = 0x8, scoped, tag = 'scoped memory for tpu_custom_call.1']
    #allocation5 [shape = 's32[2]{0}', space=sflag, size = 0x8, scoped, tag = 'scoped memory for tpu_custom_call.1']
    #allocation6 [shape = 'u8[65536]{0}', space=vmem, size = 0x10000, scoped, tag = 'input window, operand 1, single buffered']
    #allocation7 [shape = 's32[1]{0}', space=sflag, size = 0x4, scoped, tag = 'scoped memory for tpu_custom_call.1']
    #allocation8 [shape = 'u8[32768]{0}', space=vmem, size = 0x8000, scoped, tag = 'input window, operand 5, single buffered']
    #allocation9 [shape = 'u8[32768]{0}', space=vmem, size = 0x8000, scoped, tag = 'input window, operand 7, single buffered']
    #allocation10 [shape = 's32[1]{0}', space=sflag, size = 0x4, scoped, tag = 'scoped memory for tpu_custom_call.1']
    #allocation11 [shape = 'u8[16384]{0}', space=vmem, size = 0x4000, scoped, tag = 'output window, operand 0']
    %14 = vsyncpa [#allocation4], 0
    %s15 = scalar_lea.sflag [#allocation4], 1
    %16 = vsyncpa %s15, 0
    %17 = vsyncpa [#allocation7], 0
    %18 = vsyncpa [#allocation10], 0
    %19 = vsyncpa [#allocation5], 0
    %s20 = scalar_lea.sflag [#allocation5], 1
    %21 = vsyncpa %s20, 0
    loop: start=0, step=1, limit=4
    $region2: #{tpu_custom_call.1} parent=1 // loop_pre_header
      _
    $region3: #{tpu_custom_call.1} parent=1 // loop_header
      %s23 = sphi 0, %s27
      %p24 = scmp.ge.s32.totalorder %s23, 4
      %s30 = sphi 0, %s42
      %s31 = sphi 0, %s38
      %s32 = sphi 0, %s30
      %s33 = sphi 0, %s31
      %s34 = sphi 0, %s32
      %s35 = sphi 0, %s33
      %s47 = sphi 0, %s49
      %s50 = sphi 0, %s47
      %s51 = sphi 0, %s50
      %s67 = sphi 0, %s51
      %s71 = sphi 0, %s71
      %s73 = sphi 0, %s71
      %s74 = sphi 0, %s73
      %s88 = sphi 0, %s74
      %s92 = sphi 0, %s92
      %s94 = sphi 0, %s92
      %s95 = sphi 0, %s94
      %s109 = sphi 0, %s95
      %s113 = sphi 0, %s113
      %s115 = sphi 0, %s113
      %s116 = sphi 0, %s115
      %s130 = sphi 0, %s116
      %s134 = sphi 0, %s134
      %s136 = sphi 0, %s134
      %s137 = sphi 0, %s136
      %s151 = sphi 0, %s137
      %s155 = sphi 0, %s155
      %s157 = sphi 0, %s155
      %s158 = sphi 0, %s157
      %s172 = sphi 0, %s158
      %s176 = sphi 0, %s176
      %s178 = sphi 0, %s176
      %s179 = sphi 0, %s178
      %s193 = sphi 0, %s179
      %s197 = sphi 0, %s197
      %s199 = sphi 0, %s197
      %s200 = sphi 0, %s199
      %s214 = sphi 0, %s200
      %s218 = sphi 0, %s218
      %s220 = sphi 0, %s218
      %s221 = sphi 0, %s220
      %s235 = sphi 0, %s221
      %s243 = sphi 0, %s245
      %s246 = sphi 0, %s243
      %s247 = sphi 0, %s246
      %s263 = sphi 0, %s247
    $region4: #{tpu_custom_call.1} parent=1 // loop_header_branch
      %26 = sbr.rel (%p24) target = $region8
    $region5: #{tpu_custom_call.1} parent=1 // loop_body
      %s28 = ssub.s32 %s23, 1
      %s29 = ssub.s32 %s23, 2
      %s36 = sadd.s32 1, %s31
      %p37 = scmp.ge.s32.totalorder %s36, 1
      %s38 = scalar_select %p37, 0, %s36
      %s39 = sadd.s32 1, %s30
      %s40 = scalar_select %p37, %s39, %s30
      %p41 = scmp.ge.s32.totalorder %s40, 2
      %s42 = scalar_select %p41, 0, %s40
      %s43 = ssub.s32 %s30, %s42
      %s44 = ssub.s32 %s31, %s38
      %s45 = sor.u32 %s43, %s44
      %p46 = scmp.eq.s32.totalorder %s45, 0
      %s48 = sadd.s32 %s47, 1
      %s49 = scalar_select %p46, %s47, %s48
      %p52 = pneg %p46
      %p53 = scmp.eq.s32.totalorder %s23, 1
      %p54 = por %p52, %p53
      %p55 = scmp.ne.s32.totalorder %s47, %s50
      %p56 = scmp.eq.s32.totalorder %s23, 0
      %p57 = por %p55, %p56
      %p58 = scmp.ne.s32.totalorder %s47, %s50
      %p59 = scmp.eq.s32.totalorder %s28, 1
      %p60 = por %p58, %p59
      %p61 = scmp.ne.s32.totalorder %s50, %s51
      %p62 = scmp.eq.s32.totalorder %s28, 0
      %p63 = por %p61, %p62
      %p64 = scmp.ne.s32.totalorder %s50, %s51
      %p65 = scmp.eq.s32.totalorder %s29, 1
      %p66 = por %p64, %p65
      %p68 = scmp.ne.s32.totalorder %s51, %s67
      %p69 = scmp.eq.s32.totalorder %s29, 0
      %p70 = por %p68, %p69
      %s72 = sadd.s32 %s71, 1
      %p75 = scmp.eq.s32.totalorder %s23, 1
      %p76 = scmp.ne.s32.totalorder %s71, %s73
      %p77 = scmp.eq.s32.totalorder %s23, 0
      %p78 = por %p76, %p77
      %p79 = scmp.ne.s32.totalorder %s71, %s73
      %p80 = scmp.eq.s32.totalorder %s28, 1
      %p81 = por %p79, %p80
      %p82 = scmp.ne.s32.totalorder %s73, %s74
      %p83 = scmp.eq.s32.totalorder %s28, 0
      %p84 = por %p82, %p83
      %p85 = scmp.ne.s32.totalorder %s73, %s74
      %p86 = scmp.eq.s32.totalorder %s29, 1
      %p87 = por %p85, %p86
      %p89 = scmp.ne.s32.totalorder %s74, %s88
      %p90 = scmp.eq.s32.totalorder %s29, 0
      %p91 = por %p89, %p90
      %s93 = sadd.s32 %s92, 1
      %p96 = scmp.eq.s32.totalorder %s23, 1
      %p97 = scmp.ne.s32.totalorder %s92, %s94
      %p98 = scmp.eq.s32.totalorder %s23, 0
      %p99 = por %p97, %p98
      %p100 = scmp.ne.s32.totalorder %s92, %s94
      %p101 = scmp.eq.s32.totalorder %s28, 1
      %p102 = por %p100, %p101
      %p103 = scmp.ne.s32.totalorder %s94, %s95
      %p104 = scmp.eq.s32.totalorder %s28, 0
      %p105 = por %p103, %p104
      %p106 = scmp.ne.s32.totalorder %s94, %s95
      %p107 = scmp.eq.s32.totalorder %s29, 1
      %p108 = por %p106, %p107
      %p110 = scmp.ne.s32.totalorder %s95, %s109
      %p111 = scmp.eq.s32.totalorder %s29, 0
      %p112 = por %p110, %p111
      %s114 = sadd.s32 %s113, 1
      %p117 = scmp.eq.s32.totalorder %s23, 1
      %p118 = scmp.ne.s32.totalorder %s113, %s115
      %p119 = scmp.eq.s32.totalorder %s23, 0
      %p120 = por %p118, %p119
      %p121 = scmp.ne.s32.totalorder %s113, %s115
      %p122 = scmp.eq.s32.totalorder %s28, 1
      %p123 = por %p121, %p122
      %p124 = scmp.ne.s32.totalorder %s115, %s116
      %p125 = scmp.eq.s32.totalorder %s28, 0
      %p126 = por %p124, %p125
      %p127 = scmp.ne.s32.totalorder %s115, %s116
      %p128 = scmp.eq.s32.totalorder %s29, 1
      %p129 = por %p127, %p128
      %p131 = scmp.ne.s32.totalorder %s116, %s130
      %p132 = scmp.eq.s32.totalorder %s29, 0
      %p133 = por %p131, %p132
      %s135 = sadd.s32 %s134, 1
      %p138 = scmp.eq.s32.totalorder %s23, 1
      %p139 = scmp.ne.s32.totalorder %s134, %s136
      %p140 = scmp.eq.s32.totalorder %s23, 0
      %p141 = por %p139, %p140
      %p142 = scmp.ne.s32.totalorder %s134, %s136
      %p143 = scmp.eq.s32.totalorder %s28, 1
      %p144 = por %p142, %p143
      %p145 = scmp.ne.s32.totalorder %s136, %s137
      %p146 = scmp.eq.s32.totalorder %s28, 0
      %p147 = por %p145, %p146
      %p148 = scmp.ne.s32.totalorder %s136, %s137
      %p149 = scmp.eq.s32.totalorder %s29, 1
      %p150 = por %p148, %p149
      %p152 = scmp.ne.s32.totalorder %s137, %s151
      %p153 = scmp.eq.s32.totalorder %s29, 0
      %p154 = por %p152, %p153
      %s156 = sadd.s32 %s155, 1
      %p159 = scmp.eq.s32.totalorder %s23, 1
      %p160 = scmp.ne.s32.totalorder %s155, %s157
      %p161 = scmp.eq.s32.totalorder %s23, 0
      %p162 = por %p160, %p161
      %p163 = scmp.ne.s32.totalorder %s155, %s157
      %p164 = scmp.eq.s32.totalorder %s28, 1
      %p165 = por %p163, %p164
      %p166 = scmp.ne.s32.totalorder %s157, %s158
      %p167 = scmp.eq.s32.totalorder %s28, 0
      %p168 = por %p166, %p167
      %p169 = scmp.ne.s32.totalorder %s157, %s158
      %p170 = scmp.eq.s32.totalorder %s29, 1
      %p171 = por %p169, %p170
      %p173 = scmp.ne.s32.totalorder %s158, %s172
      %p174 = scmp.eq.s32.totalorder %s29, 0
      %p175 = por %p173, %p174
      %s177 = sadd.s32 %s176, 1
      %p180 = scmp.eq.s32.totalorder %s23, 1
      %p181 = scmp.ne.s32.totalorder %s176, %s178
      %p182 = scmp.eq.s32.totalorder %s23, 0
      %p183 = por %p181, %p182
      %p184 = scmp.ne.s32.totalorder %s176, %s178
      %p185 = scmp.eq.s32.totalorder %s28, 1
      %p186 = por %p184, %p185
      %p187 = scmp.ne.s32.totalorder %s178, %s179
      %p188 = scmp.eq.s32.totalorder %s28, 0
      %p189 = por %p187, %p188
      %p190 = scmp.ne.s32.totalorder %s178, %s179
      %p191 = scmp.eq.s32.totalorder %s29, 1
      %p192 = por %p190, %p191
      %p194 = scmp.ne.s32.totalorder %s179, %s193
      %p195 = scmp.eq.s32.totalorder %s29, 0
      %p196 = por %p194, %p195
      %s198 = sadd.s32 %s197, 1
      %p201 = scmp.eq.s32.totalorder %s23, 1
      %p202 = scmp.ne.s32.totalorder %s197, %s199
      %p203 = scmp.eq.s32.totalorder %s23, 0
      %p204 = por %p202, %p203
      %p205 = scmp.ne.s32.totalorder %s197, %s199
      %p206 = scmp.eq.s32.totalorder %s28, 1
      %p207 = por %p205, %p206
      %p208 = scmp.ne.s32.totalorder %s199, %s200
      %p209 = scmp.eq.s32.totalorder %s28, 0
      %p210 = por %p208, %p209
      %p211 = scmp.ne.s32.totalorder %s199, %s200
      %p212 = scmp.eq.s32.totalorder %s29, 1
      %p213 = por %p211, %p212
      %p215 = scmp.ne.s32.totalorder %s200, %s214
      %p216 = scmp.eq.s32.totalorder %s29, 0
      %p217 = por %p215, %p216
      %s219 = sadd.s32 %s218, 1
      %p222 = scmp.eq.s32.totalorder %s23, 1
      %p223 = scmp.ne.s32.totalorder %s218, %s220
      %p224 = scmp.eq.s32.totalorder %s23, 0
      %p225 = por %p223, %p224
      %p226 = scmp.ne.s32.totalorder %s218, %s220
      %p227 = scmp.eq.s32.totalorder %s28, 1
      %p228 = por %p226, %p227
      %p229 = scmp.ne.s32.totalorder %s220, %s221
      %p230 = scmp.eq.s32.totalorder %s28, 0
      %p231 = por %p229, %p230
      %p232 = scmp.ne.s32.totalorder %s220, %s221
      %p233 = scmp.eq.s32.totalorder %s29, 1
      %p234 = por %p232, %p233
      %p236 = scmp.ne.s32.totalorder %s221, %s235
      %p237 = scmp.eq.s32.totalorder %s29, 0
      %p238 = por %p236, %p237
      %s239 = ssub.s32 %s30, %s42
      %s240 = ssub.s32 %s31, %s38
      %s241 = sor.u32 %s239, %s240
      %p242 = scmp.eq.s32.totalorder %s241, 0
      %s244 = sadd.s32 %s243, 1
      %s245 = scalar_select %p242, %s243, %s244
      %p248 = pneg %p242
      %p249 = scmp.eq.s32.totalorder %s23, 1
      %p250 = por %p248, %p249
      %p251 = scmp.ne.s32.totalorder %s243, %s246
      %p252 = scmp.eq.s32.totalorder %s23, 0
      %p253 = por %p251, %p252
      %p254 = scmp.ne.s32.totalorder %s243, %s246
      %p255 = scmp.eq.s32.totalorder %s28, 1
      %p256 = por %p254, %p255
      %p257 = scmp.ne.s32.totalorder %s246, %s247
      %p258 = scmp.eq.s32.totalorder %s28, 0
      %p259 = por %p257, %p258
      %p260 = scmp.ne.s32.totalorder %s246, %s247
      %p261 = scmp.eq.s32.totalorder %s29, 1
      %p262 = por %p260, %p261
      %p264 = scmp.ne.s32.totalorder %s247, %s263
      %p265 = scmp.eq.s32.totalorder %s29, 0
      %p266 = por %p264, %p265
      %p267 = scmp.le.s32.totalorder 1, %s23
      %p268 = scmp.lt.s32.totalorder %s23, 3
      %p269 = pnand %p267, %p268
      %p270 = pneg %p269
      // Predicated region
      $region9: #{tpu_custom_call.1} parent=5 // pred_check
        _
      $region10: #{tpu_custom_call.1} parent=5 // pred_check_branch
        %272 = sbr.rel (%p269) target = $region12
      $region11: #{tpu_custom_call.1} parent=5 // pred_region
        %s273 = ssub.s32 %s23, 1
        // Predicated region
        $region13: #{tpu_custom_call.1} parent=11 // pred_check
          %p274 = pneg %p84
        $region14: #{tpu_custom_call.1} parent=11 // pred_check_branch
          %276 = sbr.rel (%p274) target = $region16
        $region15: #{tpu_custom_call.1} parent=11 // pred_region
          %s278 = ssub.s32 2048, 2048
          %279 = vsyncadd [#allocation7], %s278
          %s280 = sshll.u32 [#allocation6], 4
          %s281 = int_to_ptr.vmem [resolvable:$true] %s280
          %286 = dma.hbm_to_vmem [thread:$0]  %s1, 2048, %s281, [#allocation7], 128, 128, 8
        $region16: #{tpu_custom_call.1} parent=11 // pred_fallthru
          _
        // Predicated region
        $region17: #{tpu_custom_call.1} parent=11 // pred_check
          %p287 = pneg %p105
        $region18: #{tpu_custom_call.1} parent=11 // pred_check_branch
          %289 = sbr.rel (%p287) target = $region20
        $region19: #{tpu_custom_call.1} parent=11 // pred_region
          _
        $region20: #{tpu_custom_call.1} parent=11 // pred_fallthru
          _
        // Predicated region
        $region21: #{tpu_custom_call.1} parent=11 // pred_check
          %p290 = pneg %p126
        $region22: #{tpu_custom_call.1} parent=11 // pred_check_branch
          %292 = sbr.rel (%p290) target = $region24
        $region23: #{tpu_custom_call.1} parent=11 // pred_region
          _
        $region24: #{tpu_custom_call.1} parent=11 // pred_fallthru
          _
        // Predicated region
        $region25: #{tpu_custom_call.1} parent=11 // pred_check
          %p293 = pneg %p147
        $region26: #{tpu_custom_call.1} parent=11 // pred_check_branch
          %295 = sbr.rel (%p293) target = $region28
        $region27: #{tpu_custom_call.1} parent=11 // pred_region
          _
        $region28: #{tpu_custom_call.1} parent=11 // pred_fallthru
          _
        // Predicated region
        $region29: #{tpu_custom_call.1} parent=11 // pred_check
          %p296 = pneg %p168
        $region30: #{tpu_custom_call.1} parent=11 // pred_check_branch
          %298 = sbr.rel (%p296) target = $region32
        $region31: #{tpu_custom_call.1} parent=11 // pred_region
          %s300 = ssub.s32 1024, 1024
          %301 = vsyncadd [#allocation7], %s300
          %s302 = sshll.u32 [#allocation8], 4
          %s303 = int_to_ptr.vmem [resolvable:$true] %s302
          %308 = dma.hbm_to_vmem [thread:$0]  %s5, 1024, %s303, [#allocation7], 64, 64, 4
        $region32: #{tpu_custom_call.1} parent=11 // pred_fallthru
          _
        // Predicated region
        $region33: #{tpu_custom_call.1} parent=11 // pred_check
          %p309 = pneg %p189
        $region34: #{tpu_custom_call.1} parent=11 // pred_check_branch
          %311 = sbr.rel (%p309) target = $region36
        $region35: #{tpu_custom_call.1} parent=11 // pred_region
          _
        $region36: #{tpu_custom_call.1} parent=11 // pred_fallthru
          _
        // Predicated region
        $region37: #{tpu_custom_call.1} parent=11 // pred_check
          %p312 = pneg %p210
        $region38: #{tpu_custom_call.1} parent=11 // pred_check_branch
          %314 = sbr.rel (%p312) target = $region40
        $region39: #{tpu_custom_call.1} parent=11 // pred_region
          %s316 = ssub.s32 1024, 1024
          %317 = vsyncadd [#allocation10], %s316
          %s318 = sshll.u32 [#allocation9], 4
          %s319 = int_to_ptr.vmem [resolvable:$true] %s318
          %324 = dma.hbm_to_vmem [thread:$0]  %s7, 1024, %s319, [#allocation10], 64, 64, 4
        $region40: #{tpu_custom_call.1} parent=11 // pred_fallthru
          _
        // Predicated region
        $region41: #{tpu_custom_call.1} parent=11 // pred_check
          %p325 = pneg %p231
        $region42: #{tpu_custom_call.1} parent=11 // pred_check_branch
          %327 = sbr.rel (%p325) target = $region44
        $region43: #{tpu_custom_call.1} parent=11 // pred_region
          _
        $region44: #{tpu_custom_call.1} parent=11 // pred_fallthru
          _
      $region12: #{tpu_custom_call.1} parent=5 // pred_fallthru
        _
      %p328 = scmp.lt.s32.totalorder %s23, 2
      // Predicated region
      $region45: #{tpu_custom_call.1} parent=5 // pred_check
        %p329 = pneg %p328
      $region46: #{tpu_custom_call.1} parent=5 // pred_check_branch
        %331 = sbr.rel (%p329) target = $region48
      $region47: #{tpu_custom_call.1} parent=5 // pred_region
        // Predicated region
        $region49: #{tpu_custom_call.1} parent=47 // pred_check
          %p332 = pneg %p57
        $region50: #{tpu_custom_call.1} parent=47 // pred_check_branch
          %334 = sbr.rel (%p332) target = $region52
        $region51: #{tpu_custom_call.1} parent=47 // pred_region
          %s335 = sand.u32 %s47, 1
          %s336 = scalar_lea.sflag [#allocation4], %s335
          %s337 = sand.u32 %s47, 1
          %s338 = smul.addr %s337, 16
          %s339 = scalar_lea.vmem [#allocation3], %s338
          %s341 = ssub.s32 256, 256
          %342 = vsyncadd %s336, %s341
          %s343 = smul.addr %s31, 4
          %s344 = smul.addr %s30, 4
          %s345 = sadd.s32 %s343, %s344
          %s346 = smul.addr %s345, 64
          %s347 = scalar_lea.hbm %s0, %s346
          %s348 = sshll.u32 %s339, 4
          %s349 = int_to_ptr.vmem [resolvable:$true] %s348
          %354 = dma.hbm_to_vmem [thread:$0]  %s347, 256, %s349, %s336, 64, 64, 4
        $region52: #{tpu_custom_call.1} parent=47 // pred_fallthru
          _
      $region48: #{tpu_custom_call.1} parent=5 // pred_fallthru
        _
      %p355 = scmp.le.s32.totalorder 1, %s23
      %p356 = scmp.lt.s32.totalorder %s23, 3
      %p357 = pnand %p355, %p356
      %p358 = pneg %p357
      // Predicated region
      $region53: #{tpu_custom_call.1} parent=5 // pred_check
        _
      $region54: #{tpu_custom_call.1} parent=5 // pred_check_branch
        %360 = sbr.rel (%p357) target = $region56
      $region55: #{tpu_custom_call.1} parent=5 // pred_region
        %s361 = ssub.s32 %s23, 1
        %s362 = sand.u32 %s50, 1
        %s363 = scalar_lea.sflag [#allocation4], %s362
        %s364 = sand.u32 %s50, 1
        %s365 = smul.addr %s364, 16
        %s366 = scalar_lea.vmem [#allocation3], %s365
        // Predicated region
        $region57: #{tpu_custom_call.1} parent=55 // pred_check
          %p367 = pneg %p63
        $region58: #{tpu_custom_call.1} parent=55 // pred_check_branch
          %369 = sbr.rel (%p367) target = $region60
        $region59: #{tpu_custom_call.1} parent=55 // pred_region
          %370 = dma.done %s363, 256
        $region60: #{tpu_custom_call.1} parent=55 // pred_fallthru
          _
        // Predicated region
        $region61: #{tpu_custom_call.1} parent=55 // pred_check
          %p371 = pneg %p84
        $region62: #{tpu_custom_call.1} parent=55 // pred_check_branch
          %373 = sbr.rel (%p371) target = $region64
        $region63: #{tpu_custom_call.1} parent=55 // pred_region
          %374 = dma.done [#allocation7], 2048
        $region64: #{tpu_custom_call.1} parent=55 // pred_fallthru
          _
        // Predicated region
        $region65: #{tpu_custom_call.1} parent=55 // pred_check
          %p375 = pneg %p168
        $region66: #{tpu_custom_call.1} parent=55 // pred_check_branch
          %377 = sbr.rel (%p375) target = $region68
        $region67: #{tpu_custom_call.1} parent=55 // pred_region
          %378 = dma.done [#allocation7], 1024
        $region68: #{tpu_custom_call.1} parent=55 // pred_fallthru
          _
        // Predicated region
        $region69: #{tpu_custom_call.1} parent=55 // pred_check
          %p379 = pneg %p210
        $region70: #{tpu_custom_call.1} parent=55 // pred_check_branch
          %381 = sbr.rel (%p379) target = $region72
        $region71: #{tpu_custom_call.1} parent=55 // pred_region
          %382 = dma.done [#allocation10], 1024
        $region72: #{tpu_custom_call.1} parent=55 // pred_fallthru
          _
        %s383 = sand.u32 %s50, 1
        %s384 = scalar_lea.sflag [#allocation4], %s383
        %s385 = sand.u32 %s50, 1
        %s386 = smul.addr %s385, 16
        %s387 = scalar_lea.vmem [#allocation3], %s386
        %p388 = pneg %p63
        %p389 = pneg %p60
        %p390 = pneg %p84
        %p391 = pneg %p81
        %p392 = pneg %p105
        %p393 = pneg %p102
        %p394 = pneg %p126
        %p395 = pneg %p123
        %p396 = pneg %p147
        %p397 = pneg %p144
        %p398 = pneg %p168
        %p399 = pneg %p165
        %p400 = pneg %p189
        %p401 = pneg %p186
        %p402 = pneg %p210
        %p403 = pneg %p207
        %p404 = pneg %p231
        %p405 = pneg %p228
        %p406 = pneg %p259
        %p407 = pneg %p256
        %s408 = sand.u32 %s246, 1
        %s409 = scalar_lea.sflag [#allocation5], %s408
        %s410 = sand.u32 %s246, 1
        %s411 = smul.addr %s410, 16
        %s412 = scalar_lea.vmem [#allocation11], %s411
        %s413 = smul.u32 2, %s33
        %v415 = vld [vmem:[%s366] sm:$0xf]
        %v416 = vld [vmem:[%s366 + $0x4] sm:$0xf]
        %v417 = vld [vmem:[%s366 + $0x8] sm:$0xf]
        %v418 = vld [vmem:[%s366 + $0xc] sm:$0xf]
        %v419 = vld [vmem:[#allocation6] sm:$0xff]
        %v420 = vld [vmem:[#allocation6 + $0x8] sm:$0xff]
        %v421 = vld [vmem:[#allocation6 + $0x10] sm:$0xff]
        %v422 = vld [vmem:[#allocation6 + $0x18] sm:$0xff]
        %v423 = vld [vmem:[#allocation6 + $0x20] sm:$0xff]
        %v424 = vld [vmem:[#allocation6 + $0x28] sm:$0xff]
        %v425 = vld [vmem:[#allocation6 + $0x30] sm:$0xff]
        %v426 = vld [vmem:[#allocation6 + $0x38] sm:$0xff]
        %v427 = vld [vmem:[#allocation6 + $0x40] sm:$0xff]
        %v428 = vld [vmem:[#allocation6 + $0x48] sm:$0xff]
        %v429 = vld [vmem:[#allocation6 + $0x50] sm:$0xff]
        %v430 = vld [vmem:[#allocation6 + $0x58] sm:$0xff]
        %v431 = vld [vmem:[#allocation6 + $0x60] sm:$0xff]
        %v432 = vld [vmem:[#allocation6 + $0x68] sm:$0xff]
        %v433 = vld [vmem:[#allocation6 + $0x70] sm:$0xff]
        %v434 = vld [vmem:[#allocation6 + $0x78] sm:$0xff]
        %v435 = vld [vmem:[%s2] sm:$0x3]
        %v437 = vlaneseq
        %v438 = vshrl.u32 %v437, 7
        %v439 = vsub.s32 0, %v438
        %v440 = vrot.slane %v435, %v439
        %v441 = vlaneseq
        %v442 = vshrl.u32 %v441, 7
        %v443 = vsub.s32 1, %v442
        %v444 = vrot.slane %v435, %v443
        %v451 = vunpack.c.l.b16 %v415
        %v452 = vunpack.c.l.b16 %v416
        %v453 = vunpack.c.l.b16 %v417
        %v454 = vunpack.c.l.b16 %v418
        %v455 = vpack.c.b16 %v452, %v451
        %v456 = vpack.c.b16 %v454, %v453
        %v475 = vunpack.c.l.b16 %v419
        %v476 = vunpack.c.h.b16 %v419
        %v477 = vunpack.c.l.b16 %v420
        %v478 = vunpack.c.h.b16 %v420
        %v479 = vunpack.c.l.b16 %v421
        %v480 = vunpack.c.h.b16 %v421
        %v481 = vunpack.c.l.b16 %v422
        %v482 = vunpack.c.h.b16 %v422
        %v483 = vunpack.c.l.b16 %v423
        %v484 = vunpack.c.h.b16 %v423
        %v485 = vunpack.c.l.b16 %v424
        %v486 = vunpack.c.h.b16 %v424
        %v487 = vunpack.c.l.b16 %v425
        %v488 = vunpack.c.h.b16 %v425
        %v489 = vunpack.c.l.b16 %v426
        %v490 = vunpack.c.h.b16 %v426
        %v491 = vunpack.c.l.b16 %v427
        %v492 = vunpack.c.h.b16 %v427
        %v493 = vunpack.c.l.b16 %v428
        %v494 = vunpack.c.h.b16 %v428
        %v495 = vunpack.c.l.b16 %v429
        %v496 = vunpack.c.h.b16 %v429
        %v497 = vunpack.c.l.b16 %v430
        %v498 = vunpack.c.h.b16 %v430
        %v499 = vunpack.c.l.b16 %v431
        %v500 = vunpack.c.h.b16 %v431
        %v501 = vunpack.c.l.b16 %v432
        %v502 = vunpack.c.h.b16 %v432
        %v503 = vunpack.c.l.b16 %v433
        %v504 = vunpack.c.h.b16 %v433
        %v505 = vunpack.c.l.b16 %v434
        %v506 = vunpack.c.h.b16 %v434
        %v507 = vpack.c.b16 %v477, %v475
        %v508 = vpack.c.b16 %v478, %v476
        %v509 = vpack.c.b16 %v481, %v479
        %v510 = vpack.c.b16 %v482, %v480
        %v511 = vpack.c.b16 %v485, %v483
        %v512 = vpack.c.b16 %v486, %v484
        %v513 = vpack.c.b16 %v489, %v487
        %v514 = vpack.c.b16 %v490, %v488
        %v515 = vpack.c.b16 %v493, %v491
        %v516 = vpack.c.b16 %v494, %v492
        %v517 = vpack.c.b16 %v497, %v495
        %v518 = vpack.c.b16 %v498, %v496
        %v519 = vpack.c.b16 %v501, %v499
        %v520 = vpack.c.b16 %v502, %v500
        %v521 = vpack.c.b16 %v505, %v503
        %v522 = vpack.c.b16 %v506, %v504
        %539 = vmatprep.subr.bf16.mxu0 %v508
        %540 = vmatpush1.bf16.msra.mxu0 %v507
        %541 = vmatprep.subr.bf16.mxu0 %v510
        %542 = vmatpush1.bf16.msra.mxu0 %v509
        %543 = vmatprep.subr.bf16.mxu0 %v512
        %544 = vmatpush1.bf16.msra.mxu0 %v511
        %545 = vmatprep.subr.bf16.mxu0 %v514
        %546 = vmatpush1.bf16.msra.mxu0 %v513
        %547 = vmatprep.subr.bf16.mxu0 %v516
        %548 = vmatpush1.bf16.msra.mxu0 %v515
        %549 = vmatprep.subr.bf16.mxu0 %v518
        %550 = vmatpush1.bf16.msra.mxu0 %v517
        %551 = vmatprep.subr.bf16.mxu0 %v520
        %552 = vmatpush1.bf16.msra.mxu0 %v519
        %553 = vmatprep.subr.bf16.mxu0 %v522
        %554 = vmatpush1.bf16.msra.mxu0 %v521
        %555 = vmatprep.subr.bf16.mxu0 0
        %556 = vmatpush1.bf16.msra.mxu0 0
        %557 = vmatprep.subr.bf16.mxu0 0
        %558 = vmatpush1.bf16.msra.mxu0 0
        %559 = vmatprep.subr.bf16.mxu0 0
        %560 = vmatpush1.bf16.msra.mxu0 0
        %561 = vmatprep.subr.bf16.mxu0 0
        %562 = vmatpush1.bf16.msra.mxu0 0
        %563 = vmatprep.subr.bf16.mxu0 0
        %564 = vmatpush1.bf16.msra.mxu0 0
        %565 = vmatprep.subr.bf16.mxu0 0
        %566 = vmatpush1.bf16.msra.mxu0 0
        %567 = vmatprep.subr.bf16.mxu0 0
        %568 = vmatpush1.bf16.msra.mxu0 0
        %569 = vmatprep.subr.bf16.mxu0 0
        %570 = vmatpush1.bf16.msra.mxu0 0
        %571 = vmatprep.mubr.bf16.mxu0 0
        %572 = vmatmul.mubr.bf16.gmra.mrb[0].mxu0 %v455
        %v573 = vpop.f32.mrb[0].mxu0
        %v574 = vadd.f32 %v440, %v573
        %v575 = vpop.f32.mrb[0].mxu0
        %v576 = vpop.f32.mrb[0].mxu0
        %v577 = vadd.f32 %v440, %v576
        %v578 = vpop.f32.mrb[0].mxu0
        %v579 = vadd.f32 %v444, %v578
        %580 = vmatprep.mubr.bf16.mxu0 0
        %581 = vmatmul.mubr.bf16.gmra.mrb[0].mxu0 %v456
        %v582 = vpop.f32.mrb[0].mxu0
        %v583 = vadd.f32 %v440, %v582
        %v584 = vpop.f32.mrb[0].mxu0
        %v585 = vadd.f32 %v444, %v584
        %v586 = vpop.f32.mrb[0].mxu0
        %v587 = vadd.f32 %v440, %v586
        %v588 = vpop.f32.mrb[0].mxu0
        %589 = vdwg.mxu0
        %v590 = vmax.f32 %v574, 0.0
        %v591 = vmax.f32 %v577, 0.0
        %v592 = vmax.f32 %v583, 0.0
        %v593 = vmax.f32 %v587, 0.0
        %s594 = smul.u32 %s33, 16
        %s595 = ssub.s32 %s594, 8
        %v596 = vlaneseq
        %v597 = vshrl.u32 %v596, 7
        %v598 = vadd.s32 %v597, 8
        %v599 = vadd.s32 %v597, 16
        %v600 = vadd.s32 %v597, 24
        %v601 = vstv %s595
        %v602 = vadd.s32 %v601, %v597
        %v603 = vadd.s32 %v601, %v598
        %v604 = vadd.s32 %v601, %v599
        %v605 = vadd.s32 %v601, %v600
        %vm606 = vcmp.ge.s32.totalorder %v602, 0
        %vm607 = vcmp.ge.s32.totalorder %v603, 0
        %vm608 = vcmp.ge.s32.totalorder %v604, 0
        %vm609 = vcmp.ge.s32.totalorder %v605, 0
        %vm610 = vcmp.lt.s32.totalorder %v602, 16
        %vm611 = vcmp.lt.s32.totalorder %v603, 16
        %vm612 = vcmp.lt.s32.totalorder %v604, 16
        %vm613 = vcmp.lt.s32.totalorder %v605, 16
        %vm614 = vmand %vm606, %vm610
        %vm615 = vmand %vm607, %vm611
        %vm616 = vmand %vm608, %vm612
        %vm617 = vmand %vm609, %vm613
        %v618 = vsel %vm614, 1, 0
        %v619 = vsel %vm615, 1, 0
        %v620 = vsel %vm616, 1, 0
        %v621 = vsel %vm617, 1, 0
        %vm622 = vcmp.eq.s32.totalorder %v618, 1
        %vm623 = vcmp.eq.s32.totalorder %v619, 1
        %vm624 = vcmp.eq.s32.totalorder %v620, 1
        %vm625 = vcmp.eq.s32.totalorder %v621, 1
        %v626 = vsel %vm622, %v590, 0.0
        %v627 = vsel %vm623, %v591, 0.0
        %v628 = vsel %vm624, %v592, 0.0
        %v629 = vsel %vm625, %v593, 0.0
        %630 = vst [vmem:[#allocation2] sm:$0xff] %v626
        %631 = vst [vmem:[#allocation2 + $0x8] sm:$0xff] %v627
        %632 = vst [vmem:[#allocation2 + $0x10] sm:$0xff] %v628
        %633 = vst [vmem:[#allocation2 + $0x18] sm:$0xff] %v629
        %v634 = vld [vmem:[#allocation2 + $0x7] sm:$0xff]
        %v635 = vld [vmem:[#allocation2 + $0xf] sm:$0xff]
        %v636 = vld [vmem:[%s3] sm:$0x1]
        %v638 = vlaneseq
        %v639 = vshrl.u32 %v638, 7
        %v640 = vsub.s32 0, %v639
        %v641 = vrot.slane %v636, %v640
        %v643 = vmul.f32 %v634, %v641
        %v644 = vmul.f32 %v635, %v641
        %v645 = vadd.f32 %v643, 0.0
        %v646 = vadd.f32 %v644, 0.0
        %v647 = vld [vmem:[#allocation2 + $0x8] sm:$0xff]
        %v648 = vld [vmem:[#allocation2 + $0x10] sm:$0xff]
        %s649 = scalar_lea.vmem %s3, 1
        %v650 = vld [vmem:[%s649] sm:$0x1]
        %v652 = vlaneseq
        %v653 = vshrl.u32 %v652, 7
        %v654 = vsub.s32 0, %v653
        %v655 = vrot.slane %v650, %v654
        %v657 = vmul.f32 %v647, %v655
        %v658 = vmul.f32 %v648, %v655
        %v659 = vadd.f32 %v645, %v657
        %v660 = vadd.f32 %v646, %v658
        %v661 = vld [vmem:[#allocation2 + $0x9] sm:$0xff]
        %v662 = vld [vmem:[#allocation2 + $0x11] sm:$0xff]
        %s663 = scalar_lea.vmem %s3, 2
        %v664 = vld [vmem:[%s663] sm:$0x1]
        %v666 = vlaneseq
        %v667 = vshrl.u32 %v666, 7
        %v668 = vsub.s32 0, %v667
        %v669 = vrot.slane %v664, %v668
        %v671 = vmul.f32 %v661, %v669
        %v672 = vmul.f32 %v662, %v669
        %v673 = vadd.f32 %v659, %v671
        %v674 = vadd.f32 %v660, %v672
        %v675 = vld [vmem:[%s4] sm:$0x1]
        %v677 = vlaneseq
        %v678 = vshrl.u32 %v677, 7
        %v679 = vsub.s32 0, %v678
        %v680 = vrot.slane %v675, %v679
        %v682 = vadd.f32 %v673, %v680
        %v683 = vadd.f32 %v674, %v680
        %v684 = vmax.f32 %v682, 0.0
        %v685 = vmax.f32 %v683, 0.0
        %v686 = vpack.c.bf16 %v685, %v684
        %v687 = vld [vmem:[#allocation8] sm:$0xf]
        %v688 = vld [vmem:[#allocation8 + $0x4] sm:$0xf]
        %v689 = vld [vmem:[#allocation8 + $0x8] sm:$0xf]
        %v690 = vld [vmem:[#allocation8 + $0xc] sm:$0xf]
        %v691 = vld [vmem:[#allocation8 + $0x10] sm:$0xf]
        %v692 = vld [vmem:[#allocation8 + $0x14] sm:$0xf]
        %v693 = vld [vmem:[#allocation8 + $0x18] sm:$0xf]
        %v694 = vld [vmem:[#allocation8 + $0x1c] sm:$0xf]
        %v695 = vld [vmem:[#allocation8 + $0x20] sm:$0xf]
        %v696 = vld [vmem:[#allocation8 + $0x24] sm:$0xf]
        %v697 = vld [vmem:[#allocation8 + $0x28] sm:$0xf]
        %v698 = vld [vmem:[#allocation8 + $0x2c] sm:$0xf]
        %v699 = vld [vmem:[#allocation8 + $0x30] sm:$0xf]
        %v700 = vld [vmem:[#allocation8 + $0x34] sm:$0xf]
        %v701 = vld [vmem:[#allocation8 + $0x38] sm:$0xf]
        %v702 = vld [vmem:[#allocation8 + $0x3c] sm:$0xf]
        %v703 = vld [vmem:[%s6] sm:$0x1]
        %v705 = vlaneseq
        %v706 = vshrl.u32 %v705, 7
        %v707 = vsub.s32 0, %v706
        %v708 = vrot.slane %v703, %v707
        %v726 = vunpack.c.l.b16 %v687
        %v727 = vunpack.c.l.b16 %v688
        %v728 = vunpack.c.l.b16 %v689
        %v729 = vunpack.c.l.b16 %v690
        %v730 = vunpack.c.l.b16 %v691
        %v731 = vunpack.c.l.b16 %v692
        %v732 = vunpack.c.l.b16 %v693
        %v733 = vunpack.c.l.b16 %v694
        %v734 = vunpack.c.l.b16 %v695
        %v735 = vunpack.c.l.b16 %v696
        %v736 = vunpack.c.l.b16 %v697
        %v737 = vunpack.c.l.b16 %v698
        %v738 = vunpack.c.l.b16 %v699
        %v739 = vunpack.c.l.b16 %v700
        %v740 = vunpack.c.l.b16 %v701
        %v741 = vunpack.c.l.b16 %v702
        %v742 = vpack.c.b16 %v727, %v726
        %v743 = vpack.c.b16 %v729, %v728
        %v744 = vpack.c.b16 %v731, %v730
        %v745 = vpack.c.b16 %v733, %v732
        %v746 = vpack.c.b16 %v735, %v734
        %v747 = vpack.c.b16 %v737, %v736
        %v748 = vpack.c.b16 %v739, %v738
        %v749 = vpack.c.b16 %v741, %v740
        %758 = vmatprep.subr.bf16.mxu0 0
        %759 = vmatpush1.bf16.msra.mxu0 %v742
        %760 = vmatprep.subr.bf16.mxu0 0
        %761 = vmatpush1.bf16.msra.mxu0 %v743
        %762 = vmatprep.subr.bf16.mxu0 0
        %763 = vmatpush1.bf16.msra.mxu0 %v744
        %764 = vmatprep.subr.bf16.mxu0 0
        %765 = vmatpush1.bf16.msra.mxu0 %v745
        %766 = vmatprep.subr.bf16.mxu0 0
        %767 = vmatpush1.bf16.msra.mxu0 %v746
        %768 = vmatprep.subr.bf16.mxu0 0
        %769 = vmatpush1.bf16.msra.mxu0 %v747
        %770 = vmatprep.subr.bf16.mxu0 0
        %771 = vmatpush1.bf16.msra.mxu0 %v748
        %772 = vmatprep.subr.bf16.mxu0 0
        %773 = vmatpush1.bf16.msra.mxu0 %v749
        %774 = vmatprep.subr.bf16.mxu0 0
        %775 = vmatpush1.bf16.msra.mxu0 0
        %776 = vmatprep.subr.bf16.mxu0 0
        %777 = vmatpush1.bf16.msra.mxu0 0
        %778 = vmatprep.subr.bf16.mxu0 0
        %779 = vmatpush1.bf16.msra.mxu0 0
        %780 = vmatprep.subr.bf16.mxu0 0
        %781 = vmatpush1.bf16.msra.mxu0 0
        %782 = vmatprep.subr.bf16.mxu0 0
        %783 = vmatpush1.bf16.msra.mxu0 0
        %784 = vmatprep.subr.bf16.mxu0 0
        %785 = vmatpush1.bf16.msra.mxu0 0
        %786 = vmatprep.subr.bf16.mxu0 0
        %787 = vmatpush1.bf16.msra.mxu0 0
        %788 = vmatprep.subr.bf16.mxu0 0
        %789 = vmatpush1.bf16.msra.mxu0 0
        %790 = vmatprep.mubr.bf16.mxu0 0
        %791 = vmatmul.mubr.bf16.gmra.mrb[0].mxu0 %v686
        %v792 = vpop.f32.mrb[0].mxu0
        %v793 = vadd.f32 %v708, %v792
        %v794 = vpop.f32.mrb[0].mxu0
        %v795 = vpop.f32.mrb[0].mxu0
        %v796 = vadd.f32 %v708, %v795
        %v797 = vpop.f32.mrb[0].mxu0
        %798 = vdwg.mxu0
        %v799 = vmax.f32 %v793, 0.0
        %v800 = vmax.f32 %v796, 0.0
        %v801 = vpack.c.bf16 %v800, %v799
        %v802 = vld [vmem:[#allocation9] sm:$0xf]
        %v803 = vld [vmem:[#allocation9 + $0x4] sm:$0xf]
        %v804 = vld [vmem:[#allocation9 + $0x8] sm:$0xf]
        %v805 = vld [vmem:[#allocation9 + $0xc] sm:$0xf]
        %v806 = vld [vmem:[#allocation9 + $0x10] sm:$0xf]
        %v807 = vld [vmem:[#allocation9 + $0x14] sm:$0xf]
        %v808 = vld [vmem:[#allocation9 + $0x18] sm:$0xf]
        %v809 = vld [vmem:[#allocation9 + $0x1c] sm:$0xf]
        %v810 = vld [vmem:[#allocation9 + $0x20] sm:$0xf]
        %v811 = vld [vmem:[#allocation9 + $0x24] sm:$0xf]
        %v812 = vld [vmem:[#allocation9 + $0x28] sm:$0xf]
        %v813 = vld [vmem:[#allocation9 + $0x2c] sm:$0xf]
        %v814 = vld [vmem:[#allocation9 + $0x30] sm:$0xf]
        %v815 = vld [vmem:[#allocation9 + $0x34] sm:$0xf]
        %v816 = vld [vmem:[#allocation9 + $0x38] sm:$0xf]
        %v817 = vld [vmem:[#allocation9 + $0x3c] sm:$0xf]
        %v818 = vld [vmem:[%s8] sm:$0x1]
        %v820 = vlaneseq
        %v821 = vshrl.u32 %v820, 7
        %v822 = vsub.s32 0, %v821
        %v823 = vrot.slane %v818, %v822
        %v841 = vunpack.c.l.b16 %v802
        %v842 = vunpack.c.l.b16 %v803
        %v843 = vunpack.c.l.b16 %v804
        %v844 = vunpack.c.l.b16 %v805
        %v845 = vunpack.c.l.b16 %v806
        %v846 = vunpack.c.l.b16 %v807
        %v847 = vunpack.c.l.b16 %v808
        %v848 = vunpack.c.l.b16 %v809
        %v849 = vunpack.c.l.b16 %v810
        %v850 = vunpack.c.l.b16 %v811
        %v851 = vunpack.c.l.b16 %v812
        %v852 = vunpack.c.l.b16 %v813
        %v853 = vunpack.c.l.b16 %v814
        %v854 = vunpack.c.l.b16 %v815
        %v855 = vunpack.c.l.b16 %v816
        %v856 = vunpack.c.l.b16 %v817
        %v857 = vpack.c.b16 %v842, %v841
        %v858 = vpack.c.b16 %v844, %v843
        %v859 = vpack.c.b16 %v846, %v845
        %v860 = vpack.c.b16 %v848, %v847
        %v861 = vpack.c.b16 %v850, %v849
        %v862 = vpack.c.b16 %v852, %v851
        %v863 = vpack.c.b16 %v854, %v853
        %v864 = vpack.c.b16 %v856, %v855
        %873 = vmatprep.subr.bf16.mxu0 0
        %874 = vmatpush1.bf16.msra.mxu0 %v857
        %875 = vmatprep.subr.bf16.mxu0 0
        %876 = vmatpush1.bf16.msra.mxu0 %v858
        %877 = vmatprep.subr.bf16.mxu0 0
        %878 = vmatpush1.bf16.msra.mxu0 %v859
        %879 = vmatprep.subr.bf16.mxu0 0
        %880 = vmatpush1.bf16.msra.mxu0 %v860
        %881 = vmatprep.subr.bf16.mxu0 0
        %882 = vmatpush1.bf16.msra.mxu0 %v861
        %883 = vmatprep.subr.bf16.mxu0 0
        %884 = vmatpush1.bf16.msra.mxu0 %v862
        %885 = vmatprep.subr.bf16.mxu0 0
        %886 = vmatpush1.bf16.msra.mxu0 %v863
        %887 = vmatprep.subr.bf16.mxu0 0
        %888 = vmatpush1.bf16.msra.mxu0 %v864
        %889 = vmatprep.subr.bf16.mxu0 0
        %890 = vmatpush1.bf16.msra.mxu0 0
        %891 = vmatprep.subr.bf16.mxu0 0
        %892 = vmatpush1.bf16.msra.mxu0 0
        %893 = vmatprep.subr.bf16.mxu0 0
        %894 = vmatpush1.bf16.msra.mxu0 0
        %895 = vmatprep.subr.bf16.mxu0 0
        %896 = vmatpush1.bf16.msra.mxu0 0
        %897 = vmatprep.subr.bf16.mxu0 0
        %898 = vmatpush1.bf16.msra.mxu0 0
        %899 = vmatprep.subr.bf16.mxu0 0
        %900 = vmatpush1.bf16.msra.mxu0 0
        %901 = vmatprep.subr.bf16.mxu0 0
        %902 = vmatpush1.bf16.msra.mxu0 0
        %903 = vmatprep.subr.bf16.mxu0 0
        %904 = vmatpush1.bf16.msra.mxu0 0
        %905 = vmatprep.mubr.bf16.mxu0 0
        %906 = vmatmul.mubr.bf16.gmra.mrb[0].mxu0 %v801
        %v907 = vpop.f32.mrb[0].mxu0
        %v908 = vadd.f32 %v823, %v907
        %v909 = vpop.f32.mrb[0].mxu0
        %v910 = vpop.f32.mrb[0].mxu0
        %v911 = vadd.f32 %v823, %v910
        %v912 = vpop.f32.mrb[0].mxu0
        %913 = vdwg.mxu0
        %v914 = vmax.f32 %v908, 0.0
        %v915 = vmax.f32 %v911, 0.0
        %v916 = vadd.f32 %v914, %v579
        %v917 = vadd.f32 %v915, %v585
        %918 = vst [vmem:[%s412] sm:$0xff] %v916
        %919 = vst [vmem:[%s412 + $0x8] sm:$0xff] %v917
        %s920 = sand.u32 %s246, 1
        %s921 = scalar_lea.sflag [#allocation5], %s920
        %s922 = sand.u32 %s246, 1
        %s923 = smul.addr %s922, 16
        %s924 = scalar_lea.vmem [#allocation11], %s923
        // Predicated region
        $region73: #{tpu_custom_call.1} parent=55 // pred_check
          %p925 = pneg %p256
        $region74: #{tpu_custom_call.1} parent=55 // pred_check_branch
          %927 = sbr.rel (%p925) target = $region76
        $region75: #{tpu_custom_call.1} parent=55 // pred_region
          %s928 = smul.u32 2, %s33
          %s930 = ssub.s32 256, 256
          %931 = vsyncadd %s921, %s930
          %s932 = smul.addr %s32, 2
          %s933 = sadd.s32 %s928, %s932
          %s934 = smul.addr %s933, 128
          %s935 = scalar_lea.hbm %s9, %s934
          %s936 = sshll.u32 %s924, 4
          %s937 = int_to_ptr.vmem [resolvable:$true] %s936
          %942 = dma.vmem_to_hbm [thread:$0]  %s937, 256, %s935, %s921, 128, 128, 8
        $region76: #{tpu_custom_call.1} parent=55 // pred_fallthru
          _
      $region56: #{tpu_custom_call.1} parent=5 // pred_fallthru
        _
      %p943 = scmp.le.s32.totalorder 2, %s23
      // Predicated region
      $region77: #{tpu_custom_call.1} parent=5 // pred_check
        %p944 = pneg %p943
      $region78: #{tpu_custom_call.1} parent=5 // pred_check_branch
        %946 = sbr.rel (%p944) target = $region80
      $region79: #{tpu_custom_call.1} parent=5 // pred_region
        %s947 = ssub.s32 %s23, 2
        // Predicated region
        $region81: #{tpu_custom_call.1} parent=79 // pred_check
          %p948 = pneg %p262
        $region82: #{tpu_custom_call.1} parent=79 // pred_check_branch
          %950 = sbr.rel (%p948) target = $region84
        $region83: #{tpu_custom_call.1} parent=79 // pred_region
          %s951 = sand.u32 %s247, 1
          %s952 = scalar_lea.sflag [#allocation5], %s951
          %s953 = sand.u32 %s247, 1
          %s954 = smul.addr %s953, 16
          %s955 = scalar_lea.vmem [#allocation11], %s954
          %956 = dma.done %s952, 256
        $region84: #{tpu_custom_call.1} parent=79 // pred_fallthru
          _
      $region80: #{tpu_custom_call.1} parent=5 // pred_fallthru
        _
    $region6: #{tpu_custom_call.1} parent=1 // loop_footer
      %s27 = sadd.s32 1, %s23
    $region7: #{tpu_custom_call.1} parent=1 // loop_footer_branch
      %22 = sbr.rel target = $region3
    $region8: #{tpu_custom_call.1} parent=1 // loop_exit
      _
    %957 = vsyncpa [#allocation4], 1
    %s958 = scalar_lea.sflag [#allocation4], 1
    %959 = vsyncpa %s958, 1
    %960 = vsyncpa [#allocation7], 1
    %961 = vsyncpa [#allocation10], 1
    %962 = vsyncpa [#allocation5], 1
    %s963 = scalar_lea.sflag [#allocation5], 1
    %964 = vsyncpa %s963, 1

</llo_original>
